<compile_context>
chip_gen: v7x
topology: tpu7x:2x2x1
jax: 0.10.0
libtpu: 0.0.40
codegen_flags: <defaults>
</compile_context>

<pallas_src>
import jax
import jax.numpy as jnp
from jax.experimental import pallas as pl
from jax.experimental.pallas import tpu as pltpu


def _speech2mri_kernel(x_ref, w_ref, b_ref, wc_ref, bc_ref, out_ref):
    """One batch tile: 3-layer ReLU MLP + folded dense0/dense1 + sigmoid."""
    x = x_ref[...]                                                   # (TB, F)

    # time_distributed: three LinearLayer blocks = relu(x @ W + b), last timestep only.
    h = jnp.maximum(
        jnp.dot(x, w_ref[0], preferred_element_type=jnp.float32) + b_ref[0], 0.0)
    h = jnp.maximum(
        jnp.dot(h, w_ref[1], preferred_element_type=jnp.float32) + b_ref[1], 0.0)
    h = jnp.maximum(
        jnp.dot(h, w_ref[2], preferred_element_type=jnp.float32) + b_ref[2], 0.0)

    # dense0 folded into dense1 (no activation between them), then sigmoid.
    y = jnp.dot(h, wc_ref[...], preferred_element_type=jnp.float32) + bc_ref[...]
    out_ref[...] = jax.nn.sigmoid(y)                                 # (TB, W*H)


def _choose_batch_tile(batch):
    """Pick a batch tile; single full-array block for small B, 8-aligned tiles otherwise."""
    if batch <= 8:
        return batch, batch                       # block == full array (no (8,128) issue)
    b_pad = ((batch + 7) // 8) * 8
    tb = min(b_pad, 256)
    b_pad = ((b_pad + tb - 1) // tb) * tb
    return tb, b_pad


def speech2mri_forward(x, params, *, n_width, n_height):
    """x: (B, N, n_mgc) float32 -> (B, n_width, n_height) float32."""
    B, N, n_mgc = x.shape
    (w1, b1, w2, b2, w3, b3, w0, b0, wf, bf) = params
    n_feats = w1.shape[1]
    out_dim = wf.shape[1]

    # Only the last timestep reaches dense0/dense1 in this config and the MLP is
    # per-timestep, so slice it before the kernel (drops (N-1)/N of the work).
    x_last = x[:, -1, :]                                             # (B, n_mgc)

    # Pack operands: pad w1's input dim to n_feats so it stacks with w2/w3.
    assert n_mgc <= n_feats, "operand packing assumes n_mgc <= n_feats"
    x_last = jnp.pad(x_last, ((0, 0), (0, n_feats - n_mgc)))
    w1p = jnp.pad(w1, ((0, n_feats - n_mgc), (0, 0)))
    w_stack = jnp.stack([w1p, w2, w3], axis=0)                       # (3, F, F)
    b_stack = jnp.stack([b1, b2, b3], axis=0)                        # (3, 1, F)

    # Fold dense0 into dense1 (no nonlinearity between them).
    wc = w0 @ wf                                                     # (F, W*H)
    bc = b0 @ wf + bf                                                # (1, W*H)

    # Batch tiling (parallel grid axis -> megacore-friendly for large B).
    tb, b_pad = _choose_batch_tile(B)
    if b_pad != B:
        x_last = jnp.pad(x_last, ((0, b_pad - B), (0, 0)))
    grid = (b_pad // tb,)

    y = pl.pallas_call(
        _speech2mri_kernel,
        out_shape=jax.ShapeDtypeStruct((b_pad, out_dim), jnp.float32),
        grid=grid,
        in_specs=[
            pl.BlockSpec((tb, n_feats), lambda i: (i, 0)),           # x (last step)
            pl.BlockSpec((3, n_feats, n_feats), lambda i: (0, 0, 0)),  # stacked hidden W
            pl.BlockSpec((3, 1, n_feats), lambda i: (0, 0, 0)),        # stacked hidden b
            pl.BlockSpec((n_feats, out_dim), lambda i: (0, 0)),        # folded dense W
            pl.BlockSpec((1, out_dim), lambda i: (0, 0)),              # folded dense b
        ],
        out_specs=pl.BlockSpec((tb, out_dim), lambda i: (i, 0)),
        compiler_params=pltpu.CompilerParams(
            dimension_semantics=("parallel",)),
    )(x_last, w_stack, b_stack, wc, bc)

    # final_channel == 1 (use_deform=False): view(B, 1, W, H).squeeze()
    return y[:B].reshape(B, n_width, n_height)


def _kaiming_normal(key, shape_in_out):
    """kaiming_normal_(nonlinearity='relu'), weight returned as (in, out)."""
    fan_in, fan_out = shape_in_out
    std = (2.0 / fan_in) ** 0.5
    return std * jax.random.normal(key, (fan_in, fan_out), dtype=jnp.float32)


def init_params(key, n_mgc, n_feats, n_width, n_height, final_channel=1):
    ks = jax.random.split(key, 5)
    out_dim = n_width * n_height * final_channel
    # Biases are zero-initialized in the module; stored as (1, F) for lane layout.
    w1 = _kaiming_normal(ks[0], (n_mgc, n_feats));   b1 = jnp.zeros((1, n_feats), jnp.float32)
    w2 = _kaiming_normal(ks[1], (n_feats, n_feats)); b2 = jnp.zeros((1, n_feats), jnp.float32)
    w3 = _kaiming_normal(ks[2], (n_feats, n_feats)); b3 = jnp.zeros((1, n_feats), jnp.float32)
    w0 = _kaiming_normal(ks[3], (n_feats, n_feats)); b0 = jnp.zeros((1, n_feats), jnp.float32)
    wf = _kaiming_normal(ks[4], (n_feats, out_dim)); bf = jnp.zeros((1, out_dim), jnp.float32)
    return (w1, b1, w2, b2, w3, b3, w0, b0, wf, bf)


def reference_forward(x, params, *, n_width, n_height):
    """Pure-JAX reference mirroring the PyTorch forward for this config."""
    (w1, b1, w2, b2, w3, b3, w0, b0, wf, bf) = params
    B, N, M = x.shape
    h = x.reshape(B * N, M)
    h = jnp.maximum(h @ w1 + b1, 0.0)
    h = jnp.maximum(h @ w2 + b2, 0.0)
    h = jnp.maximum(h @ w3 + b3, 0.0)
    h = h.reshape(B, N, -1)
    last = h[:, -1, :]
    d0 = last @ w0 + b0
    d1 = d0 @ wf + bf
    y = jax.nn.sigmoid(d1)
    return y.reshape(B, n_width, n_height)


if __name__ == "__main__":
    # Small shapes consistent with the module's forward:
    # batch B=2, sequence N=8, n_mgc=25, n_feats=32, image 16x16.
    B, N = 2, 8
    n_mgc, n_feats = 25, 32
    n_width = n_height = 16

    key = jax.random.PRNGKey(0)
    k_x, k_p = jax.random.split(key)
    x = jax.random.normal(k_x, (B, N, n_mgc), dtype=jnp.float32)
    params = init_params(k_p, n_mgc, n_feats, n_width, n_height)

    out = speech2mri_forward(x, params, n_width=n_width, n_height=n_height)
    out = jax.block_until_ready(out)

    ref = reference_forward(x, params, n_width=n_width, n_height=n_height)
    assert out.shape == (B, n_width, n_height), out.shape
    assert jnp.allclose(out, ref, atol=1e-5, rtol=1e-5), \
        float(jnp.max(jnp.abs(out - ref)))

    print("KERNEL_OK")
</pallas_src>

<mosaic_0001>
module attributes {stable_mosaic.version = 11 : i64} {
  func.func @_speech2mri_kernel(%arg0: i32, %arg1: memref<2x32xf32, #tpu.memory_space<vmem>>, %arg2: memref<3x32x32xf32, #tpu.memory_space<vmem>>, %arg3: memref<3x1x32xf32, #tpu.memory_space<vmem>>, %arg4: memref<32x256xf32, #tpu.memory_space<vmem>>, %arg5: memref<1x256xf32, #tpu.memory_space<vmem>>, %arg6: memref<2x256xf32, #tpu.memory_space<vmem>>) attributes {dimension_semantics = [#tpu.dimension_semantics<parallel>], iteration_bounds = array<i64: 1>, scalar_prefetch = 0 : i64, scratch_operands = 0 : i64, tpu.core_type = #tpu.core_type<tc>, window_params = [{transform_indices = @transform_0, window_bounds = array<i64: 2, 32>}, {pipeline_mode = #tpu.pipeline_mode<synchronous>, transform_indices = @transform_1, window_bounds = array<i64: 3, 32, 32>}, {pipeline_mode = #tpu.pipeline_mode<synchronous>, transform_indices = @transform_2, window_bounds = array<i64: 3, 1, 32>}, {pipeline_mode = #tpu.pipeline_mode<synchronous>, transform_indices = @transform_3, window_bounds = array<i64: 32, 256>}, {pipeline_mode = #tpu.pipeline_mode<synchronous>, transform_indices = @transform_4, window_bounds = array<i64: 1, 256>}, {transform_indices = @transform_5, window_bounds = array<i64: 2, 256>}]} {
    %c0 = arith.constant 0 : index
    %c0_0 = arith.constant 0 : index
    %0 = vector.load %arg1[%c0, %c0_0] : memref<2x32xf32, #tpu.memory_space<vmem>>, vector<2x32xf32>
    %c0_1 = arith.constant 0 : index
    %c0_2 = arith.constant 0 : index
    %c0_3 = arith.constant 0 : index
    %1 = vector.load %arg2[%c0_1, %c0_2, %c0_3] : memref<3x32x32xf32, #tpu.memory_space<vmem>>, vector<1x32x32xf32>
    %2 = vector.shape_cast %1 : vector<1x32x32xf32> to vector<32x32xf32>
    %cst = arith.constant dense<0.000000e+00> : vector<2x32xf32>
    %3 = tpu.matmul %0, %2, %cst {dimension_numbers = #tpu.dot_dimension_numbers<[1], [0], [0], [1], [0, 0, 1, 1], [], []>} : vector<2x32xf32>, vector<32x32xf32>, vector<2x32xf32> -> vector<2x32xf32>
    %c0_4 = arith.constant 0 : index
    %c0_5 = arith.constant 0 : index
    %c0_6 = arith.constant 0 : index
    %4 = vector.load %arg3[%c0_4, %c0_5, %c0_6] : memref<3x1x32xf32, #tpu.memory_space<vmem>>, vector<1x1x32xf32>
    %5 = vector.shape_cast %4 : vector<1x1x32xf32> to vector<1x32xf32>
    %6 = vector.broadcast %5 : vector<1x32xf32> to vector<2x32xf32>
    %7 = arith.addf %3, %6 : vector<2x32xf32>
    %cst_7 = arith.constant 0.000000e+00 : f32
    %8 = vector.broadcast %cst_7 : f32 to vector<2x32xf32>
    %9 = arith.maximumf %7, %8 : vector<2x32xf32>
    %c1 = arith.constant 1 : index
    %c0_8 = arith.constant 0 : index
    %c0_9 = arith.constant 0 : index
    %10 = vector.load %arg2[%c1, %c0_8, %c0_9] : memref<3x32x32xf32, #tpu.memory_space<vmem>>, vector<1x32x32xf32>
    %11 = vector.shape_cast %10 : vector<1x32x32xf32> to vector<32x32xf32>
    %cst_10 = arith.constant dense<0.000000e+00> : vector<2x32xf32>
    %12 = tpu.matmul %9, %11, %cst_10 {dimension_numbers = #tpu.dot_dimension_numbers<[1], [0], [0], [1], [0, 0, 1, 1], [], []>} : vector<2x32xf32>, vector<32x32xf32>, vector<2x32xf32> -> vector<2x32xf32>
    %c1_11 = arith.constant 1 : index
    %c0_12 = arith.constant 0 : index
    %c0_13 = arith.constant 0 : index
    %13 = vector.load %arg3[%c1_11, %c0_12, %c0_13] : memref<3x1x32xf32, #tpu.memory_space<vmem>>, vector<1x1x32xf32>
    %14 = vector.shape_cast %13 : vector<1x1x32xf32> to vector<1x32xf32>
    %15 = vector.broadcast %14 : vector<1x32xf32> to vector<2x32xf32>
    %16 = arith.addf %12, %15 : vector<2x32xf32>
    %cst_14 = arith.constant 0.000000e+00 : f32
    %17 = vector.broadcast %cst_14 : f32 to vector<2x32xf32>
    %18 = arith.maximumf %16, %17 : vector<2x32xf32>
    %c2 = arith.constant 2 : index
    %c0_15 = arith.constant 0 : index
    %c0_16 = arith.constant 0 : index
    %19 = vector.load %arg2[%c2, %c0_15, %c0_16] : memref<3x32x32xf32, #tpu.memory_space<vmem>>, vector<1x32x32xf32>
    %20 = vector.shape_cast %19 : vector<1x32x32xf32> to vector<32x32xf32>
    %cst_17 = arith.constant dense<0.000000e+00> : vector<2x32xf32>
    %21 = tpu.matmul %18, %20, %cst_17 {dimension_numbers = #tpu.dot_dimension_numbers<[1], [0], [0], [1], [0, 0, 1, 1], [], []>} : vector<2x32xf32>, vector<32x32xf32>, vector<2x32xf32> -> vector<2x32xf32>
    %c2_18 = arith.constant 2 : index
    %c0_19 = arith.constant 0 : index
    %c0_20 = arith.constant 0 : index
    %22 = vector.load %arg3[%c2_18, %c0_19, %c0_20] : memref<3x1x32xf32, #tpu.memory_space<vmem>>, vector<1x1x32xf32>
    %23 = vector.shape_cast %22 : vector<1x1x32xf32> to vector<1x32xf32>
    %24 = vector.broadcast %23 : vector<1x32xf32> to vector<2x32xf32>
    %25 = arith.addf %21, %24 : vector<2x32xf32>
    %cst_21 = arith.constant 0.000000e+00 : f32
    %26 = vector.broadcast %cst_21 : f32 to vector<2x32xf32>
    %27 = arith.maximumf %25, %26 : vector<2x32xf32>
    %c0_22 = arith.constant 0 : index
    %c0_23 = arith.constant 0 : index
    %28 = vector.load %arg4[%c0_22, %c0_23] : memref<32x256xf32, #tpu.memory_space<vmem>>, vector<32x256xf32>
    %cst_24 = arith.constant dense<0.000000e+00> : vector<2x256xf32>
    %29 = tpu.matmul %27, %28, %cst_24 {dimension_numbers = #tpu.dot_dimension_numbers<[1], [0], [0], [1], [0, 0, 1, 1], [], []>} : vector<2x32xf32>, vector<32x256xf32>, vector<2x256xf32> -> vector<2x256xf32>
    %c0_25 = arith.constant 0 : index
    %c0_26 = arith.constant 0 : index
    %30 = vector.load %arg5[%c0_25, %c0_26] : memref<1x256xf32, #tpu.memory_space<vmem>>, vector<1x256xf32>
    %31 = vector.broadcast %30 : vector<1x256xf32> to vector<2x256xf32>
    %32 = arith.addf %29, %31 : vector<2x256xf32>
    %33 = arith.negf %32 : vector<2x256xf32>
    %34 = math.exp %33 : vector<2x256xf32>
    %cst_27 = arith.constant 1.000000e+00 : f32
    %35 = vector.broadcast %cst_27 : f32 to vector<2x256xf32>
    %36 = arith.addf %35, %34 : vector<2x256xf32>
    %37 = arith.divf %35, %36 : vector<2x256xf32>
    %c0_28 = arith.constant 0 : index
    %c0_29 = arith.constant 0 : index
    %38 = vector.load %arg6[%c0_28, %c0_29] : memref<2x256xf32, #tpu.memory_space<vmem>>, vector<2x256xf32>
    tpu.vector_store %arg6[%c0_28, %c0_29], %37 {strides = array<i32>} : memref<2x256xf32, #tpu.memory_space<vmem>>, vector<2x256xf32>,
    return
  }
  func.func @transform_0(%arg0: i32) -> (i32, i32) {
    %c0_i32 = arith.constant 0 : i32
    %c0_i32_0 = arith.constant 0 : i32
    return %arg0, %c0_i32 : i32, i32
  }
  func.func @transform_1(%arg0: i32) -> (i32, i32, i32) {
    %c0_i32 = arith.constant 0 : i32
    %c0_i32_0 = arith.constant 0 : i32
    %c0_i32_1 = arith.constant 0 : i32
    %c0_i32_2 = arith.constant 0 : i32
    return %c0_i32, %c0_i32_0, %c0_i32_1 : i32, i32, i32
  }
  func.func @transform_2(%arg0: i32) -> (i32, i32, i32) {
    %c0_i32 = arith.constant 0 : i32
    %c0_i32_0 = arith.constant 0 : i32
    %c0_i32_1 = arith.constant 0 : i32
    %c0_i32_2 = arith.constant 0 : i32
    return %c0_i32, %c0_i32_0, %c0_i32_1 : i32, i32, i32
  }
  func.func @transform_3(%arg0: i32) -> (i32, i32) {
    %c0_i32 = arith.constant 0 : i32
    %c0_i32_0 = arith.constant 0 : i32
    %c0_i32_1 = arith.constant 0 : i32
    return %c0_i32, %c0_i32_0 : i32, i32
  }
  func.func @transform_4(%arg0: i32) -> (i32, i32) {
    %c0_i32 = arith.constant 0 : i32
    %c0_i32_0 = arith.constant 0 : i32
    %c0_i32_1 = arith.constant 0 : i32
    return %c0_i32, %c0_i32_0 : i32, i32
  }
  func.func @transform_5(%arg0: i32) -> (i32, i32) {
    %c0_i32 = arith.constant 0 : i32
    %c0_i32_0 = arith.constant 0 : i32
    return %arg0, %c0_i32 : i32, i32
  }
}

</mosaic_0001>

<llo_original>
// kernel: tpu_custom_call.1
$region0: #{tpu_custom_call.1}
  #allocation0 [shape = 'u32[]', space=smem, size = 0x4, offset = 0x4, fixed_abs, tag = 'smem constant byte address 0x4 - core index']
  #allocation1 [shape = 'u32[144,128]{1,0:T(1,128)}', space=vmem, size = 0x12000, scoped, tag = 'internal scratch']
  %s0 = inlined_call_operand.hbm [shape: f32[2,32], index: 0, kind: input, shape index: {}]
  %s1 = inlined_call_operand.hbm [shape: f32[3,32,32], index: 1, kind: input, shape index: {}]
  %s2 = inlined_call_operand.vmem [shape: f32[3,1,32], index: 2, kind: input, shape index: {}]
  %s3 = inlined_call_operand.hbm [shape: f32[32,256], index: 3, kind: input, shape index: {}]
  %s4 = inlined_call_operand.vmem [shape: f32[1,256], index: 4, kind: input, shape index: {}]
  %s5 = inlined_call_operand.hbm [shape: f32[2,256], index: 5, kind: output, shape index: {}]
  %s6 = sld [smem:[#allocation0]]
  $region42: #{tpu_custom_call.1} parent=0
    _
  %s8 = ssub.s32 1, %s6
  %s9 = scalar_select 0, %s8, %s6
  $region1: #{tpu_custom_call.1} parent=0
    #allocation2 [shape = 'u8[1024]{0}', space=vmem, size = 0x400, scoped, tag = 'input window, operand 0, single buffered']
    #allocation3 [shape = 's32[1]{0}', space=sflag, size = 0x4, scoped, tag = 'scoped memory for tpu_custom_call.1']
    #allocation4 [shape = 's32[1]{0}', space=sflag, size = 0x4, scoped, tag = 'scoped memory for tpu_custom_call.1']
    #allocation5 [shape = 'u8[49152]{0}', space=vmem, size = 0xc000, scoped, tag = 'input window, operand 1, single buffered']
    #allocation6 [shape = 's32[1]{0}', space=sflag, size = 0x4, scoped, tag = 'scoped memory for tpu_custom_call.1']
    #allocation7 [shape = 'u8[32768]{0}', space=vmem, size = 0x8000, scoped, tag = 'input window, operand 3, single buffered']
    #allocation8 [shape = 'u8[2048]{0}', space=vmem, size = 0x800, scoped, tag = 'output window, operand 0, single buffered']
    %10 = vsyncpa [#allocation3], 0
    %11 = vsyncpa [#allocation6], 0
    %12 = vsyncpa [#allocation4], 0
    // Predicated region
    $region2: #{tpu_custom_call.1} parent=1 // pred_check
      _
    $region3: #{tpu_custom_call.1} parent=1 // pred_check_branch
      %14 = sbr.rel (0) target = $region5
    $region4: #{tpu_custom_call.1} parent=1 // pred_region
      %s16 = ssub.s32 32, 32
      %17 = vsyncadd [#allocation3], %s16
      %s19 = sshll.u32 [#allocation2], 4
      %s20 = int_to_ptr.vmem [resolvable:$true] %s19
      %22 = dma.hbm_to_vmem [thread:$0]  %s0, 32, %s20, [#allocation3]
    $region5: #{tpu_custom_call.1} parent=1 // pred_fallthru
      _
    // Predicated region
    $region6: #{tpu_custom_call.1} parent=1 // pred_check
      _
    $region7: #{tpu_custom_call.1} parent=1 // pred_check_branch
      %24 = sbr.rel (0) target = $region9
    $region8: #{tpu_custom_call.1} parent=1 // pred_region
      %s26 = ssub.s32 1536, 1536
      %27 = vsyncadd [#allocation6], %s26
      %s28 = sshll.u32 [#allocation5], 4
      %s29 = int_to_ptr.vmem [resolvable:$true] %s28
      %34 = dma.hbm_to_vmem [thread:$0]  %s1, 1536, %s29, [#allocation6], 128, 128, 8
    $region9: #{tpu_custom_call.1} parent=1 // pred_fallthru
      _
    // Predicated region
    $region10: #{tpu_custom_call.1} parent=1 // pred_check
      _
    $region11: #{tpu_custom_call.1} parent=1 // pred_check_branch
      %36 = sbr.rel (0) target = $region13
    $region12: #{tpu_custom_call.1} parent=1 // pred_region
      _
    $region13: #{tpu_custom_call.1} parent=1 // pred_fallthru
      _
    // Predicated region
    $region14: #{tpu_custom_call.1} parent=1 // pred_check
      _
    $region15: #{tpu_custom_call.1} parent=1 // pred_check_branch
      %38 = sbr.rel (0) target = $region17
    $region16: #{tpu_custom_call.1} parent=1 // pred_region
      %s40 = ssub.s32 1024, 1024
      %41 = vsyncadd [#allocation6], %s40
      %s42 = sshll.u32 [#allocation7], 4
      %s43 = int_to_ptr.vmem [resolvable:$true] %s42
      %48 = dma.hbm_to_vmem [thread:$0]  %s3, 1024, %s43, [#allocation6], 256, 256, 16
    $region17: #{tpu_custom_call.1} parent=1 // pred_fallthru
      _
    // Predicated region
    $region18: #{tpu_custom_call.1} parent=1 // pred_check
      _
    $region19: #{tpu_custom_call.1} parent=1 // pred_check_branch
      %50 = sbr.rel (0) target = $region21
    $region20: #{tpu_custom_call.1} parent=1 // pred_region
      _
    $region21: #{tpu_custom_call.1} parent=1 // pred_fallthru
      _
    // Predicated region
    $region22: #{tpu_custom_call.1} parent=1 // pred_check
      _
    $region23: #{tpu_custom_call.1} parent=1 // pred_check_branch
      %52 = sbr.rel (0) target = $region25
    $region24: #{tpu_custom_call.1} parent=1 // pred_region
      %53 = dma.done [#allocation3], 32
    $region25: #{tpu_custom_call.1} parent=1 // pred_fallthru
      _
    // Predicated region
    $region26: #{tpu_custom_call.1} parent=1 // pred_check
      _
    $region27: #{tpu_custom_call.1} parent=1 // pred_check_branch
      %55 = sbr.rel (0) target = $region29
    $region28: #{tpu_custom_call.1} parent=1 // pred_region
      %56 = dma.done [#allocation6], 1536
    $region29: #{tpu_custom_call.1} parent=1 // pred_fallthru
      _
    // Predicated region
    $region30: #{tpu_custom_call.1} parent=1 // pred_check
      _
    $region31: #{tpu_custom_call.1} parent=1 // pred_check_branch
      %58 = sbr.rel (0) target = $region33
    $region32: #{tpu_custom_call.1} parent=1 // pred_region
      %59 = dma.done [#allocation6], 1024
    $region33: #{tpu_custom_call.1} parent=1 // pred_fallthru
      _
    %v60 = vld [vmem:[#allocation2] sm:$0x3]
    %v61 = vld [vmem:[#allocation5] sm:$0xff]
    %v62 = vld [vmem:[#allocation5 + $0x8] sm:$0xff]
    %v63 = vld [vmem:[#allocation5 + $0x10] sm:$0xff]
    %v64 = vld [vmem:[#allocation5 + $0x18] sm:$0xff]
    %v65 = vld [vmem:[%s2] sm:$0x1]
    %v67 = vlaneseq
    %v68 = vshrl.u32 %v67, 7
    %v69 = vsub.s32 0, %v68
    %v70 = vrot.slane %v65, %v69
    %vm72 = vcmask 261120
    %v74 = vsel %vm72, %v60, 0
    %76 = vmatprep.subr.mxu0 0.0
    %77 = vmatpush1.msra.mxu0 %v61
    %78 = vmatprep.subr.mxu0 0.0
    %79 = vmatpush1.msra.mxu0 %v62
    %80 = vmatprep.subr.mxu0 0.0
    %81 = vmatpush1.msra.mxu0 %v63
    %82 = vmatprep.subr.mxu0 0.0
    %83 = vmatpush1.msra.mxu0 %v64
    %84 = vmatprep.subr.mxu0 0.0
    %85 = vmatpush1.msra.mxu0 0.0
    %86 = vmatprep.subr.mxu0 0.0
    %87 = vmatpush1.msra.mxu0 0.0
    %88 = vmatprep.subr.mxu0 0.0
    %89 = vmatpush1.msra.mxu0 0.0
    %90 = vmatprep.subr.mxu0 0.0
    %91 = vmatpush1.msra.mxu0 0.0
    %92 = vmatprep.subr.mxu0 0.0
    %93 = vmatpush1.msra.mxu0 0.0
    %94 = vmatprep.subr.mxu0 0.0
    %95 = vmatpush1.msra.mxu0 0.0
    %96 = vmatprep.subr.mxu0 0.0
    %97 = vmatpush1.msra.mxu0 0.0
    %98 = vmatprep.subr.mxu0 0.0
    %99 = vmatpush1.msra.mxu0 0.0
    %100 = vmatprep.subr.mxu0 0.0
    %101 = vmatpush1.msra.mxu0 0.0
    %102 = vmatprep.subr.mxu0 0.0
    %103 = vmatpush1.msra.mxu0 0.0
    %104 = vmatprep.subr.mxu0 0.0
    %105 = vmatpush1.msra.mxu0 0.0
    %106 = vmatprep.subr.mxu0 0.0
    %107 = vmatpush1.msra.mxu0 0.0
    %108 = vmatprep.subr.mxu0 0.0
    %109 = vmatpush1.msra.mxu0 0.0
    %110 = vmatprep.subr.mxu0 0.0
    %111 = vmatpush1.msra.mxu0 0.0
    %112 = vmatprep.subr.mxu0 0.0
    %113 = vmatpush1.msra.mxu0 0.0
    %114 = vmatprep.subr.mxu0 0.0
    %115 = vmatpush1.msra.mxu0 0.0
    %116 = vmatprep.subr.mxu0 0.0
    %117 = vmatpush1.msra.mxu0 0.0
    %118 = vmatprep.subr.mxu0 0.0
    %119 = vmatpush1.msra.mxu0 0.0
    %120 = vmatprep.subr.mxu0 0.0
    %121 = vmatpush1.msra.mxu0 0.0
    %122 = vmatprep.subr.mxu0 0.0
    %123 = vmatpush1.msra.mxu0 0.0
    %124 = vmatprep.subr.mxu0 0.0
    %125 = vmatpush1.msra.mxu0 0.0
    %126 = vmatprep.subr.mxu0 0.0
    %127 = vmatpush1.msra.mxu0 0.0
    %128 = vmatprep.subr.mxu0 0.0
    %129 = vmatpush1.msra.mxu0 0.0
    %130 = vmatprep.subr.mxu0 0.0
    %131 = vmatpush1.msra.mxu0 0.0
    %132 = vmatprep.subr.mxu0 0.0
    %133 = vmatpush1.msra.mxu0 0.0
    %134 = vmatprep.subr.mxu0 0.0
    %135 = vmatpush1.msra.mxu0 0.0
    %136 = vmatprep.subr.mxu0 0.0
    %137 = vmatpush1.msra.mxu0 0.0
    %138 = vmatprep.subr.mxu0 0.0
    %139 = vmatpush1.msra.mxu0 0.0
    %140 = vmatprep.mubr.f32.mxu0 0.0
    %141 = vmatmul.mubr.f32.gmra.mrb[0].mxu0 %v74
    %v142 = vpop.f32.mrb[0].mxu0
    %v143 = vadd.f32 %v70, %v142
    %v144 = vpop.f32.mrb[0].mxu0
    %145 = vdwg.mxu0
    %v146 = vmax.f32 %v143, 0.0
    %s147 = scalar_lea.vmem [#allocation5], 32
    %v148 = vld [vmem:[%s147] sm:$0xff]
    %v149 = vld [vmem:[%s147 + $0x8] sm:$0xff]
    %v150 = vld [vmem:[%s147 + $0x10] sm:$0xff]
    %v151 = vld [vmem:[%s147 + $0x18] sm:$0xff]
    %s152 = scalar_lea.vmem %s2, 1
    %v153 = vld [vmem:[%s152] sm:$0x1]
    %v155 = vlaneseq
    %v156 = vshrl.u32 %v155, 7
    %v157 = vsub.s32 0, %v156
    %v158 = vrot.slane %v153, %v157
    %v161 = vsel %vm72, %v146, 0
    %163 = vmatprep.subr.mxu0 0.0
    %164 = vmatpush1.msra.mxu0 %v148
    %165 = vmatprep.subr.mxu0 0.0
    %166 = vmatpush1.msra.mxu0 %v149
    %167 = vmatprep.subr.mxu0 0.0
    %168 = vmatpush1.msra.mxu0 %v150
    %169 = vmatprep.subr.mxu0 0.0
    %170 = vmatpush1.msra.mxu0 %v151
    %171 = vmatprep.subr.mxu0 0.0
    %172 = vmatpush1.msra.mxu0 0.0
    %173 = vmatprep.subr.mxu0 0.0
    %174 = vmatpush1.msra.mxu0 0.0
    %175 = vmatprep.subr.mxu0 0.0
    %176 = vmatpush1.msra.mxu0 0.0
    %177 = vmatprep.subr.mxu0 0.0
    %178 = vmatpush1.msra.mxu0 0.0
    %179 = vmatprep.subr.mxu0 0.0
    %180 = vmatpush1.msra.mxu0 0.0
    %181 = vmatprep.subr.mxu0 0.0
    %182 = vmatpush1.msra.mxu0 0.0
    %183 = vmatprep.subr.mxu0 0.0
    %184 = vmatpush1.msra.mxu0 0.0
    %185 = vmatprep.subr.mxu0 0.0
    %186 = vmatpush1.msra.mxu0 0.0
    %187 = vmatprep.subr.mxu0 0.0
    %188 = vmatpush1.msra.mxu0 0.0
    %189 = vmatprep.subr.mxu0 0.0
    %190 = vmatpush1.msra.mxu0 0.0
    %191 = vmatprep.subr.mxu0 0.0
    %192 = vmatpush1.msra.mxu0 0.0
    %193 = vmatprep.subr.mxu0 0.0
    %194 = vmatpush1.msra.mxu0 0.0
    %195 = vmatprep.subr.mxu0 0.0
    %196 = vmatpush1.msra.mxu0 0.0
    %197 = vmatprep.subr.mxu0 0.0
    %198 = vmatpush1.msra.mxu0 0.0
    %199 = vmatprep.subr.mxu0 0.0
    %200 = vmatpush1.msra.mxu0 0.0
    %201 = vmatprep.subr.mxu0 0.0
    %202 = vmatpush1.msra.mxu0 0.0
    %203 = vmatprep.subr.mxu0 0.0
    %204 = vmatpush1.msra.mxu0 0.0
    %205 = vmatprep.subr.mxu0 0.0
    %206 = vmatpush1.msra.mxu0 0.0
    %207 = vmatprep.subr.mxu0 0.0
    %208 = vmatpush1.msra.mxu0 0.0
    %209 = vmatprep.subr.mxu0 0.0
    %210 = vmatpush1.msra.mxu0 0.0
    %211 = vmatprep.subr.mxu0 0.0
    %212 = vmatpush1.msra.mxu0 0.0
    %213 = vmatprep.subr.mxu0 0.0
    %214 = vmatpush1.msra.mxu0 0.0
    %215 = vmatprep.subr.mxu0 0.0
    %216 = vmatpush1.msra.mxu0 0.0
    %217 = vmatprep.subr.mxu0 0.0
    %218 = vmatpush1.msra.mxu0 0.0
    %219 = vmatprep.subr.mxu0 0.0
    %220 = vmatpush1.msra.mxu0 0.0
    %221 = vmatprep.subr.mxu0 0.0
    %222 = vmatpush1.msra.mxu0 0.0
    %223 = vmatprep.subr.mxu0 0.0
    %224 = vmatpush1.msra.mxu0 0.0
    %225 = vmatprep.subr.mxu0 0.0
    %226 = vmatpush1.msra.mxu0 0.0
    %227 = vmatprep.mubr.f32.mxu0 0.0
    %228 = vmatmul.mubr.f32.gmra.mrb[0].mxu0 %v161
    %v229 = vpop.f32.mrb[0].mxu0
    %v230 = vadd.f32 %v158, %v229
    %v231 = vpop.f32.mrb[0].mxu0
    %232 = vdwg.mxu0
    %v233 = vmax.f32 %v230, 0.0
    %s234 = scalar_lea.vmem [#allocation5], 64
    %v235 = vld [vmem:[%s234] sm:$0xff]
    %v236 = vld [vmem:[%s234 + $0x8] sm:$0xff]
    %v237 = vld [vmem:[%s234 + $0x10] sm:$0xff]
    %v238 = vld [vmem:[%s234 + $0x18] sm:$0xff]
    %s239 = scalar_lea.vmem %s2, 2
    %v240 = vld [vmem:[%s239] sm:$0x1]
    %v242 = vlaneseq
    %v243 = vshrl.u32 %v242, 7
    %v244 = vsub.s32 0, %v243
    %v245 = vrot.slane %v240, %v244
    %v248 = vsel %vm72, %v233, 0
    %250 = vmatprep.subr.mxu0 0.0
    %251 = vmatpush1.msra.mxu0 %v235
    %252 = vmatprep.subr.mxu0 0.0
    %253 = vmatpush1.msra.mxu0 %v236
    %254 = vmatprep.subr.mxu0 0.0
    %255 = vmatpush1.msra.mxu0 %v237
    %256 = vmatprep.subr.mxu0 0.0
    %257 = vmatpush1.msra.mxu0 %v238
    %258 = vmatprep.subr.mxu0 0.0
    %259 = vmatpush1.msra.mxu0 0.0
    %260 = vmatprep.subr.mxu0 0.0
    %261 = vmatpush1.msra.mxu0 0.0
    %262 = vmatprep.subr.mxu0 0.0
    %263 = vmatpush1.msra.mxu0 0.0
    %264 = vmatprep.subr.mxu0 0.0
    %265 = vmatpush1.msra.mxu0 0.0
    %266 = vmatprep.subr.mxu0 0.0
    %267 = vmatpush1.msra.mxu0 0.0
    %268 = vmatprep.subr.mxu0 0.0
    %269 = vmatpush1.msra.mxu0 0.0
    %270 = vmatprep.subr.mxu0 0.0
    %271 = vmatpush1.msra.mxu0 0.0
    %272 = vmatprep.subr.mxu0 0.0
    %273 = vmatpush1.msra.mxu0 0.0
    %274 = vmatprep.subr.mxu0 0.0
    %275 = vmatpush1.msra.mxu0 0.0
    %276 = vmatprep.subr.mxu0 0.0
    %277 = vmatpush1.msra.mxu0 0.0
    %278 = vmatprep.subr.mxu0 0.0
    %279 = vmatpush1.msra.mxu0 0.0
    %280 = vmatprep.subr.mxu0 0.0
    %281 = vmatpush1.msra.mxu0 0.0
    %282 = vmatprep.subr.mxu0 0.0
    %283 = vmatpush1.msra.mxu0 0.0
    %284 = vmatprep.subr.mxu0 0.0
    %285 = vmatpush1.msra.mxu0 0.0
    %286 = vmatprep.subr.mxu0 0.0
    %287 = vmatpush1.msra.mxu0 0.0
    %288 = vmatprep.subr.mxu0 0.0
    %289 = vmatpush1.msra.mxu0 0.0
    %290 = vmatprep.subr.mxu0 0.0
    %291 = vmatpush1.msra.mxu0 0.0
    %292 = vmatprep.subr.mxu0 0.0
    %293 = vmatpush1.msra.mxu0 0.0
    %294 = vmatprep.subr.mxu0 0.0
    %295 = vmatpush1.msra.mxu0 0.0
    %296 = vmatprep.subr.mxu0 0.0
    %297 = vmatpush1.msra.mxu0 0.0
    %298 = vmatprep.subr.mxu0 0.0
    %299 = vmatpush1.msra.mxu0 0.0
    %300 = vmatprep.subr.mxu0 0.0
    %301 = vmatpush1.msra.mxu0 0.0
    %302 = vmatprep.subr.mxu0 0.0
    %303 = vmatpush1.msra.mxu0 0.0
    %304 = vmatprep.subr.mxu0 0.0
    %305 = vmatpush1.msra.mxu0 0.0
    %306 = vmatprep.subr.mxu0 0.0
    %307 = vmatpush1.msra.mxu0 0.0
    %308 = vmatprep.subr.mxu0 0.0
    %309 = vmatpush1.msra.mxu0 0.0
    %310 = vmatprep.subr.mxu0 0.0
    %311 = vmatpush1.msra.mxu0 0.0
    %312 = vmatprep.subr.mxu0 0.0
    %313 = vmatpush1.msra.mxu0 0.0
    %314 = vmatprep.mubr.f32.mxu0 0.0
    %315 = vmatmul.mubr.f32.gmra.mrb[0].mxu0 %v248
    %v316 = vpop.f32.mrb[0].mxu0
    %v317 = vadd.f32 %v245, %v316
    %v318 = vpop.f32.mrb[0].mxu0
    %319 = vdwg.mxu0
    %v320 = vmax.f32 %v317, 0.0
    %v321 = vld [vmem:[#allocation7] sm:$0xff]
    %v322 = vld [vmem:[#allocation7 + $0x8] sm:$0xff]
    %v323 = vld [vmem:[#allocation7 + $0x10] sm:$0xff]
    %v324 = vld [vmem:[#allocation7 + $0x18] sm:$0xff]
    %v325 = vld [vmem:[#allocation7 + $0x20] sm:$0xff]
    %v326 = vld [vmem:[#allocation7 + $0x28] sm:$0xff]
    %v327 = vld [vmem:[#allocation7 + $0x30] sm:$0xff]
    %v328 = vld [vmem:[#allocation7 + $0x38] sm:$0xff]
    %v329 = vld [vmem:[%s4] sm:$0x3]
    %v331 = vlaneseq
    %v332 = vshrl.u32 %v331, 7
    %v333 = vsub.s32 0, %v332
    %v334 = vrot.slane %v329, %v333
    %v335 = vlaneseq
    %v336 = vshrl.u32 %v335, 7
    %v337 = vsub.s32 1, %v336
    %v338 = vrot.slane %v329, %v337
    %v342 = vsel %vm72, %v320, 0
    %344 = vmatprep.subr.mxu0 %v322
    %345 = vmatpush1.msra.mxu0 %v321
    %346 = vmatprep.subr.mxu0 %v324
    %347 = vmatpush1.msra.mxu0 %v323
    %348 = vmatprep.subr.mxu0 %v326
    %349 = vmatpush1.msra.mxu0 %v325
    %350 = vmatprep.subr.mxu0 %v328
    %351 = vmatpush1.msra.mxu0 %v327
    %352 = vmatprep.subr.mxu0 0.0
    %353 = vmatpush1.msra.mxu0 0.0
    %354 = vmatprep.subr.mxu0 0.0
    %355 = vmatpush1.msra.mxu0 0.0
    %356 = vmatprep.subr.mxu0 0.0
    %357 = vmatpush1.msra.mxu0 0.0
    %358 = vmatprep.subr.mxu0 0.0
    %359 = vmatpush1.msra.mxu0 0.0
    %360 = vmatprep.subr.mxu0 0.0
    %361 = vmatpush1.msra.mxu0 0.0
    %362 = vmatprep.subr.mxu0 0.0
    %363 = vmatpush1.msra.mxu0 0.0
    %364 = vmatprep.subr.mxu0 0.0
    %365 = vmatpush1.msra.mxu0 0.0
    %366 = vmatprep.subr.mxu0 0.0
    %367 = vmatpush1.msra.mxu0 0.0
    %368 = vmatprep.subr.mxu0 0.0
    %369 = vmatpush1.msra.mxu0 0.0
    %370 = vmatprep.subr.mxu0 0.0
    %371 = vmatpush1.msra.mxu0 0.0
    %372 = vmatprep.subr.mxu0 0.0
    %373 = vmatpush1.msra.mxu0 0.0
    %374 = vmatprep.subr.mxu0 0.0
    %375 = vmatpush1.msra.mxu0 0.0
    %376 = vmatprep.subr.mxu0 0.0
    %377 = vmatpush1.msra.mxu0 0.0
    %378 = vmatprep.subr.mxu0 0.0
    %379 = vmatpush1.msra.mxu0 0.0
    %380 = vmatprep.subr.mxu0 0.0
    %381 = vmatpush1.msra.mxu0 0.0
    %382 = vmatprep.subr.mxu0 0.0
    %383 = vmatpush1.msra.mxu0 0.0
    %384 = vmatprep.subr.mxu0 0.0
    %385 = vmatpush1.msra.mxu0 0.0
    %386 = vmatprep.subr.mxu0 0.0
    %387 = vmatpush1.msra.mxu0 0.0
    %388 = vmatprep.subr.mxu0 0.0
    %389 = vmatpush1.msra.mxu0 0.0
    %390 = vmatprep.subr.mxu0 0.0
    %391 = vmatpush1.msra.mxu0 0.0
    %392 = vmatprep.subr.mxu0 0.0
    %393 = vmatpush1.msra.mxu0 0.0
    %394 = vmatprep.subr.mxu0 0.0
    %395 = vmatpush1.msra.mxu0 0.0
    %396 = vmatprep.subr.mxu0 0.0
    %397 = vmatpush1.msra.mxu0 0.0
    %398 = vmatprep.subr.mxu0 0.0
    %399 = vmatpush1.msra.mxu0 0.0
    %400 = vmatprep.subr.mxu0 0.0
    %401 = vmatpush1.msra.mxu0 0.0
    %402 = vmatprep.subr.mxu0 0.0
    %403 = vmatpush1.msra.mxu0 0.0
    %404 = vmatprep.subr.mxu0 0.0
    %405 = vmatpush1.msra.mxu0 0.0
    %406 = vmatprep.subr.mxu0 0.0
    %407 = vmatpush1.msra.mxu0 0.0
    %408 = vmatprep.mubr.f32.mxu0 0.0
    %409 = vmatmul.mubr.f32.gmra.mrb[0].mxu0 %v342
    %v410 = vpop.f32.mrb[0].mxu0
    %v411 = vadd.f32 %v334, %v410
    %v412 = vpop.f32.mrb[0].mxu0
    %v413 = vadd.f32 %v338, %v412
    %414 = vdwg.mxu0
    %v415 = vxor.u32 %v411, 2147483648
    %v416 = vxor.u32 %v413, 2147483648
    %v417 = vmul.f32 %v415, 1.442695
    %v418 = vpow.pop %v417
    %v419 = vmul.f32 %v416, 1.442695
    %v420 = vpow.pop %v419
    %v421 = vadd.f32 %v418, 1.0
    %v422 = vadd.f32 %v420, 1.0
    %v423 = vrcp.pop %v421
    %v424 = vmul.f32 1.0, %v423
    %v425 = vrcp.pop %v422
    %v426 = vmul.f32 1.0, %v425
    %v429 = vcombine.low %v424, %v426
    %v431 = vunpack.c.l.s4 1983009808
    %v432 = vunpack.c.0.s8 %v431
    %v433 = vlaneseq
    %v434 = vshrl.u32 %v433, 7
    %v435 = vsub.s32 %v432, %v434
    %v436 = vrot.slane %v429, %v435
    %438 = vst [vmem:[#allocation8] sm:$0xf] %v436
    // Predicated region
    $region34: #{tpu_custom_call.1} parent=1 // pred_check
      _
    $region35: #{tpu_custom_call.1} parent=1 // pred_check_branch
      %440 = sbr.rel (0) target = $region37
    $region36: #{tpu_custom_call.1} parent=1 // pred_region
      %s442 = ssub.s32 64, 64
      %443 = vsyncadd [#allocation4], %s442
      %s445 = sshll.u32 [#allocation8], 4
      %s446 = int_to_ptr.vmem [resolvable:$true] %s445
      %448 = dma.vmem_to_hbm [thread:$0]  %s446, 64, %s5, [#allocation4]
    $region37: #{tpu_custom_call.1} parent=1 // pred_fallthru
      _
    // Predicated region
    $region38: #{tpu_custom_call.1} parent=1 // pred_check
      _
    $region39: #{tpu_custom_call.1} parent=1 // pred_check_branch
      %450 = sbr.rel (0) target = $region41
    $region40: #{tpu_custom_call.1} parent=1 // pred_region
      %451 = dma.done [#allocation4], 64
    $region41: #{tpu_custom_call.1} parent=1 // pred_fallthru
      _
    %452 = vsyncpa [#allocation3], 1
    %453 = vsyncpa [#allocation6], 1
    %454 = vsyncpa [#allocation4], 1

</llo_original>
